<compile_context>
chip_gen: v6e
topology: v6e:2x2x1
jax: 0.10.0
libtpu: 0.0.40
codegen_flags: <defaults>
</compile_context>

<pallas_src>
import jax
import jax.numpy as jnp
from jax.experimental import pallas as pl
from jax.experimental.pallas import tpu as pltpu

# Lane-dense row width cap for the (M, N) flattened view of the copy path.
_MAX_LANE_WIDTH = 8192
# Target HBM->HBM DMA chunk size (1-4 MiB already reaches HBM roofline).
_CHUNK_BYTES = 4 * 1024 * 1024
# Number of DMAs kept in flight.
_NSLOTS = 4


def _lane_dense_view(x: jax.Array) -> jax.Array:
    """Flatten x to (M, N), N a large multiple of 128 when possible."""
    total = x.size
    if total % 128 == 0:
        n = 128
        while n * 2 <= _MAX_LANE_WIDTH and total % (n * 2) == 0:
            n *= 2
        return x.reshape(total // n, n)
    # Non-128-divisible totals: copied as one contiguous (1, total) DMA —
    # never touches VMEM, so it cannot exceed any VMEM budget.
    return x.reshape(1, total)


def _make_hbm_copy_kernel(m: int, n: int, cm: int, nslots: int):
    """HBM->HBM chunked copy with up to `nslots` DMAs in flight."""
    nfull = m // cm
    rem = m % cm

    def kernel(x_hbm, o_hbm, sem):
        def chunk_copy(i, slot):
            start = i * cm
            return pltpu.make_async_copy(
                x_hbm.at[pl.ds(start, cm), :],
                o_hbm.at[pl.ds(start, cm), :],
                sem.at[slot],
            )

        # Prime the pipeline: start the first min(nslots, nfull) chunk DMAs.
        for s in range(min(nslots, nfull)):  # tiny static loop
            chunk_copy(s, s).start()

        # Steady state: wait chunk i, immediately reuse its slot for i+nslots.
        @pl.loop(0, nfull)
        def _(i):
            slot = i % nslots
            chunk_copy(i, slot).wait()

            @pl.when(i + nslots < nfull)
            def _():
                chunk_copy(i + nslots, slot).start()

        # Tail rows (if cm does not divide m): one extra static-size DMA.
        if rem > 0:
            start = nfull * cm
            tail = pltpu.make_async_copy(
                x_hbm.at[pl.ds(start, rem), :],
                o_hbm.at[pl.ds(start, rem), :],
                sem.at[0],
            )
            tail.start()
            tail.wait()

    return kernel


def unsqueeze_pallas(
    x: jax.Array,
    dim: int,
    *,
    force_materialize: bool = False,
    chunk_bytes: int = _CHUNK_BYTES,
) -> jax.Array:
    """Equivalent of torch.unsqueeze(x, dim).

    Default: metadata-only reshape (free, matches torch view semantics).
    force_materialize=True: produce a fresh copy via chunked HBM->HBM DMA.
    """
    nd = x.ndim
    # torch.unsqueeze accepts dim in [-(nd+1), nd]
    if not (-(nd + 1) <= dim <= nd):
        raise ValueError(f"dim {dim} out of range for rank-{nd} tensor")
    d = dim if dim >= 0 else dim + nd + 1
    out_shape = x.shape[:d] + (1,) + x.shape[d:]

    # Fast path (and empty tensors): unsqueeze is metadata-only; jnp.reshape
    # on a contiguous array is a free bitcast in XLA — zero HBM traffic.
    if not force_materialize or x.size == 0:
        return jnp.reshape(x, out_shape)

    itemsize = jnp.dtype(x.dtype).itemsize
    total_bytes = x.size * itemsize

    x2 = _lane_dense_view(x)
    m, n = x2.shape
    row_bytes = n * itemsize
    cm = max(1, min(m, chunk_bytes // max(row_bytes, 1)))

    kernel = _make_hbm_copy_kernel(m, n, cm, _NSLOTS)

    y2 = pl.pallas_call(
        kernel,
        out_shape=jax.ShapeDtypeStruct((m, n), x.dtype),
        in_specs=[pl.BlockSpec(memory_space=pl.ANY)],
        out_specs=pl.BlockSpec(memory_space=pl.ANY),
        scratch_shapes=[pltpu.SemaphoreType.DMA((_NSLOTS,))],
        cost_estimate=pl.CostEstimate(
            flops=0, transcendentals=0, bytes_accessed=2 * total_bytes
        ),
    )(x2)

    # Free metadata reshape: insert the size-1 axis.
    return y2.reshape(out_shape)


class Unsqueeze:
    """JAX/Pallas port of refiners.fluxion.layers.basics.Unsqueeze."""

    def __init__(self, dim: int, force_materialize: bool = False) -> None:
        self.dim = dim
        self.force_materialize = force_materialize

    def __call__(self, x: jax.Array) -> jax.Array:
        return unsqueeze_pallas(x, self.dim,
                                force_materialize=self.force_materialize)


if __name__ == "__main__":
    key = jax.random.PRNGKey(0)
    k_small, k_mid, k_big = jax.random.split(key, 3)

    # 1) Default path (metadata-only reshape), small 4-D tensor.
    x_small = jax.random.normal(k_small, (2, 4, 16, 16), dtype=jnp.float32)
    out = jax.block_until_ready(Unsqueeze(dim=1)(x_small))
    assert out.shape == (2, 1, 4, 16, 16), out.shape
    assert out.dtype == x_small.dtype
    assert jnp.array_equal(out, jnp.expand_dims(x_small, 1))

    out_neg = jax.block_until_ready(Unsqueeze(dim=-1)(x_small))
    assert out_neg.shape == (2, 4, 16, 16, 1)
    assert jnp.array_equal(out_neg, jnp.expand_dims(x_small, -1))

    # 2) Forced materialize on the same tensor: single HBM->HBM DMA chunk.
    out_f = jax.block_until_ready(
        unsqueeze_pallas(x_small, 1, force_materialize=True))
    assert out_f.shape == (2, 1, 4, 16, 16)
    assert jnp.array_equal(out_f, jnp.expand_dims(x_small, 1))

    # 3) Docstring example shape (10, 10), not a multiple of 128:
    #    falls back to a single contiguous (1, 100) DMA.
    x_doc = jax.random.normal(k_mid, (10, 10), dtype=jnp.float32)
    out_doc = jax.block_until_ready(
        unsqueeze_pallas(x_doc, 1, force_materialize=True))
    assert out_doc.shape == (10, 1, 10), out_doc.shape
    assert jnp.array_equal(out_doc, jnp.expand_dims(x_doc, 1))

    # 4) 1 MiB tensor with a tiny chunk_bytes to exercise the multi-chunk
    #    pipeline (m=32 rows x 8192 lanes, cm=4 -> 8 chunks, 4 DMAs in flight).
    x_big = jax.random.normal(k_big, (4, 4, 128, 128), dtype=jnp.float32)
    out_big = jax.block_until_ready(
        unsqueeze_pallas(x_big, 2, force_materialize=True,
                         chunk_bytes=128 * 1024))
    assert out_big.shape == (4, 4, 1, 128, 128), out_big.shape
    assert out_big.dtype == x_big.dtype
    assert jnp.array_equal(out_big, jnp.expand_dims(x_big, 2))

    out_big_neg = jax.block_until_ready(
        unsqueeze_pallas(x_big, -1, force_materialize=True))
    assert out_big_neg.shape == (4, 4, 128, 128, 1)
    assert jnp.array_equal(out_big_neg, jnp.expand_dims(x_big, -1))

    # 5) Zero-sized tensor: handled by the early reshape path.
    x_empty = jnp.zeros((0, 4), dtype=jnp.float32)
    out_empty = jax.block_until_ready(Unsqueeze(dim=0)(x_empty))
    assert out_empty.shape == (1, 0, 4)

    print("KERNEL_OK")
</pallas_src>

<mosaic_0001>
module attributes {stable_mosaic.version = 11 : i64} {
  func.func @kernel(%arg0: memref<1x2048xf32, #tpu.memory_space<any>>, %arg1: memref<1x2048xf32, #tpu.memory_space<any>>, %arg2: memref<4x!tpu.dma_semaphore, #tpu.memory_space<semaphore_mem>>) attributes {dimension_semantics = [], scalar_prefetch = 0 : i64, scratch_operands = 1 : i64, tpu.core_type = #tpu.core_type<tc>} {
    %c0_i32 = arith.constant 0 : i32
    %c0_i32_0 = arith.constant 0 : i32
    %c0_i32_1 = arith.constant 0 : i32
    %0 = tpu.memref_slice %arg0[%c0_i32_0, %c0_i32_1] : memref<1x2048xf32, #tpu.memory_space<any>> -> memref<1x2048xf32, #tpu.memory_space<any>>
    %c0_i32_2 = arith.constant 0 : i32
    %c0_i32_3 = arith.constant 0 : i32
    %1 = tpu.memref_slice %arg1[%c0_i32_2, %c0_i32_3] : memref<1x2048xf32, #tpu.memory_space<any>> -> memref<1x2048xf32, #tpu.memory_space<any>>
    %2 = tpu.memref_slice %arg2[%c0_i32] : memref<4x!tpu.dma_semaphore, #tpu.memory_space<semaphore_mem>> -> memref<1x!tpu.dma_semaphore, #tpu.memory_space<semaphore_mem>>
    %3 = tpu.memref_squeeze %2 : memref<1x!tpu.dma_semaphore, #tpu.memory_space<semaphore_mem>> -> memref<!tpu.dma_semaphore, #tpu.memory_space<semaphore_mem>>
    tpu.enqueue_dma source(%0 : memref<1x2048xf32, #tpu.memory_space<any>>) target(%1 : memref<1x2048xf32, #tpu.memory_space<any>>) target_semaphore(%3 : memref<!tpu.dma_semaphore, #tpu.memory_space<semaphore_mem>>)
    %c0_i32_4 = arith.constant 0 : i32
    %c1_i32 = arith.constant 1 : i32
    %4 = arith.muli %c0_i32_4, %c1_i32 : i32
    %c0_i32_5 = arith.constant 0 : i32
    %5 = arith.addi %c0_i32_5, %4 : i32
    %c4_i32 = arith.constant 4 : i32
    %c0_i32_6 = arith.constant 0 : i32
    %6 = arith.cmpi eq, %c4_i32, %c0_i32_6 : i32
    %c1_i32_7 = arith.constant 1 : i32
    %7 = arith.select %6, %c1_i32_7, %c4_i32 : i32
    %8 = arith.remsi %5, %7 : i32
    %c0_i32_8 = arith.constant 0 : i32
    %9 = arith.cmpi ne, %8, %c0_i32_8 : i32
    %c0_i32_9 = arith.constant 0 : i32
    %10 = arith.cmpi slt, %8, %c0_i32_9 : i32
    %c0_i32_10 = arith.constant 0 : i32
    %11 = arith.cmpi slt, %7, %c0_i32_10 : i32
    %12 = arith.xori %10, %11 : i1
    %13 = arith.andi %12, %9 : i1
    %14 = arith.addi %8, %7 : i32
    %15 = arith.select %13, %14, %8 : i32
    %c1_i32_11 = arith.constant 1 : i32
    %16 = arith.muli %5, %c1_i32_11 : i32
    %c0_i32_12 = arith.constant 0 : i32
    %17 = tpu.memref_slice %arg0[%16, %c0_i32_12] : memref<1x2048xf32, #tpu.memory_space<any>> -> memref<1x2048xf32, #tpu.memory_space<any>>
    %c0_i32_13 = arith.constant 0 : i32
    %18 = tpu.memref_slice %arg1[%16, %c0_i32_13] : memref<1x2048xf32, #tpu.memory_space<any>> -> memref<1x2048xf32, #tpu.memory_space<any>>
    %19 = tpu.memref_slice %arg2[%15] : memref<4x!tpu.dma_semaphore, #tpu.memory_space<semaphore_mem>> -> memref<1x!tpu.dma_semaphore, #tpu.memory_space<semaphore_mem>>
    %20 = tpu.memref_squeeze %19 : memref<1x!tpu.dma_semaphore, #tpu.memory_space<semaphore_mem>> -> memref<!tpu.dma_semaphore, #tpu.memory_space<semaphore_mem>>
    tpu.wait_dma2 semaphore(%20 : memref<!tpu.dma_semaphore, #tpu.memory_space<semaphore_mem>>) src(%17 : memref<1x2048xf32, #tpu.memory_space<any>>) dst(%18 : memref<1x2048xf32, #tpu.memory_space<any>>)
    %c4_i32_14 = arith.constant 4 : i32
    %21 = arith.addi %5, %c4_i32_14 : i32
    %c1_i32_15 = arith.constant 1 : i32
    %22 = arith.cmpi slt, %21, %c1_i32_15 : i32
    %23 = arith.extui %22 : i1 to i32
    %c0_i32_16 = arith.constant 0 : i32
    %24 = arith.cmpi ne, %23, %c0_i32_16 : i32
    scf.if %24 {
      %c4_i32_18 = arith.constant 4 : i32
      %25 = arith.addi %5, %c4_i32_18 : i32
      %c1_i32_19 = arith.constant 1 : i32
      %26 = arith.muli %25, %c1_i32_19 : i32
      %c0_i32_20 = arith.constant 0 : i32
      %27 = tpu.memref_slice %arg0[%26, %c0_i32_20] : memref<1x2048xf32, #tpu.memory_space<any>> -> memref<1x2048xf32, #tpu.memory_space<any>>
      %c0_i32_21 = arith.constant 0 : i32
      %28 = tpu.memref_slice %arg1[%26, %c0_i32_21] : memref<1x2048xf32, #tpu.memory_space<any>> -> memref<1x2048xf32, #tpu.memory_space<any>>
      %29 = tpu.memref_slice %arg2[%15] : memref<4x!tpu.dma_semaphore, #tpu.memory_space<semaphore_mem>> -> memref<1x!tpu.dma_semaphore, #tpu.memory_space<semaphore_mem>>
      %30 = tpu.memref_squeeze %29 : memref<1x!tpu.dma_semaphore, #tpu.memory_space<semaphore_mem>> -> memref<!tpu.dma_semaphore, #tpu.memory_space<semaphore_mem>>
      tpu.enqueue_dma source(%27 : memref<1x2048xf32, #tpu.memory_space<any>>) target(%28 : memref<1x2048xf32, #tpu.memory_space<any>>) target_semaphore(%30 : memref<!tpu.dma_semaphore, #tpu.memory_space<semaphore_mem>>)
    } else {
    }
    %c1_i32_17 = arith.constant 1 : i32
    return
  }
}

</mosaic_0001>

<llo_original>
// kernel: tpu_custom_call.1
$region0: #{tpu_custom_call.1}
  #allocation0 [shape = 'u32[]', space=smem, size = 0x4, offset = 0x4, fixed_abs, tag = 'smem constant byte address 0x4 - core index']
  #allocation1 [shape = 'u32[144,128]{1,0:T(1,128)}', space=vmem, size = 0x12000, scoped, tag = 'internal scratch']
  #allocation2 [shape = 's32[4]{0}', space=sflag, size = 0x10, scoped, tag = 'scratch operand']
  #allocation3 [shape = 's32[]', space=sflag, size = 0x4, offset = 0, fixed_abs, tag = 'sflag constant byte address 0x0 - dummy sync flag']
  #allocation4 [shape = 'u32[0]{0}', space=smem, size = 0, offset = 0, fixed_abs, tag = 'smem constant byte address 0x0 - null']
  %s0 = inlined_call_operand.hbm [shape: f32[1,2048], index: 0, kind: input, shape index: {}]
  %s1 = inlined_call_operand.hbm [shape: f32[1,2048], index: 1, kind: output, shape index: {}]
  %s2 = sld [smem:[#allocation0]]
  $region2: #{tpu_custom_call.1} parent=0
    _
  %s4 = ssub.s32 1, %s2
  %s5 = scalar_select 0, %s4, %s2
  %s7 = sshll.u32 1, 14
  %s8 = sxor.u32 4294967295, %s7
  %12 = dma.general %s0, 256, %s1, [#allocation2], 131072, [#allocation4], 0, 0
  %s13 = smul.u32 1, 16
  %s14 = sshll.u32 %s13, 4
  %15 = dma.done [#allocation2], %s14
  %16 = vsyncmov [#allocation2]
  %s17 = vpop.sfrf %16
  %p18 = scmp.eq.s32.totalorder %s17, 0
  %p19 = pneg %p18
  %21 = shalt.err (%p19)
  %s22 = scalar_lea.sflag [#allocation2], 1
  %23 = vsyncmov %s22
  %s24 = vpop.sfrf %23
  %p25 = scmp.eq.s32.totalorder %s24, 0
  %p26 = pneg %p25
  %28 = shalt.err (%p26)
  %s29 = scalar_lea.sflag [#allocation2], 2
  %30 = vsyncmov %s29
  %s31 = vpop.sfrf %30
  %p32 = scmp.eq.s32.totalorder %s31, 0
  %p33 = pneg %p32
  %35 = shalt.err (%p33)
  %s36 = scalar_lea.sflag [#allocation2], 3
  %37 = vsyncmov %s36
  %s38 = vpop.sfrf %37
  %p39 = scmp.eq.s32.totalorder %s38, 0
  %p40 = pneg %p39
  %42 = shalt.err (%p40)

</llo_original>
